<compile_context>
chip_gen: v5e
topology: v5e:2x2
jax: 0.10.0
libtpu: 0.0.40
codegen_flags: <defaults>
</compile_context>

<pallas_src>
import functools

import jax
import jax.numpy as jnp
from jax.experimental import pallas as pl
from jax.experimental.pallas import tpu as pltpu


def _patch_embed_kernel(x_ref, w_ref, b_ref, o_ref):
    # x_ref: (TM, K_pad) bf16   w_ref: (K_pad, E_pad) bf16
    # b_ref: (1, E_pad) f32     o_ref: (TM, E_pad) out_dtype
    acc = jnp.dot(x_ref[...], w_ref[...], preferred_element_type=jnp.float32)
    o_ref[...] = (acc + b_ref[...]).astype(o_ref.dtype)


def _round_up(v, m):
    return ((v + m - 1) // m) * m


def _choose_tm(M, tm_cap):
    """Pick the M-tile size.

    Preference order: multiple of 16 that divides M exactly (no padding),
    then multiple of 8 that divides M, then a plain multiple of 16 (pad M).
    `tm_cap` already accounts for the VMEM budget and the >=2-tile preference
    for large M (megacore sharding).
    """
    if M < 16:
        return _round_up(max(M, 1), 8)
    cap = max(16, min(tm_cap, M))
    for step in (16, 8):
        start = (cap // step) * step
        for cand in range(start, step - 1, -step):
            if M % cand == 0:
                return cand
    return max(16, (cap // 16) * 16)


@functools.partial(jax.jit, static_argnums=(3, 4, 5))
def patch_embed(x, weight, bias, patch_size, out_dtype=jnp.bfloat16, tm=1024):
    """x: (B, C, H, W) f32; weight: (E, C, P, P); bias: (E,).

    Returns (B, num_patches, E) matching PyTorch PatchEmbed.forward
    (values in `out_dtype`, bf16 by default per the perf review).
    """
    B, C, H, W = x.shape
    E = weight.shape[0]
    P = patch_size
    if H % P != 0 or W % P != 0:
        raise ValueError("H and W must be divisible by patch_size")
    Hp, Wp = H // P, W // P
    num_patches = Hp * Wp
    K = C * P * P
    M = B * num_patches

    # --- wrapper glue: patch extraction (plain JAX), done in bf16 so the
    # materialized (M, K) slab costs 2 B/elem instead of 4.
    x_bf = x.astype(jnp.bfloat16)
    xp = x_bf.reshape(B, C, Hp, P, Wp, P)
    xp = jnp.transpose(xp, (0, 2, 4, 1, 3, 5))      # (B, ph, pw, C, kh, kw)
    xp = xp.reshape(M, K)

    # weight (E, C, P, P) -> (E, K) -> (K, E), same (c, kh, kw) flatten order.
    wt = weight.reshape(E, K).T.astype(jnp.bfloat16)
    b2 = bias.reshape(1, E).astype(jnp.float32)

    # Lane-align the contraction and output dims (zero padding is exact).
    K_pad = max(128, _round_up(K, 128))
    E_pad = max(128, _round_up(E, 128))
    if K_pad != K:
        xp = jnp.pad(xp, ((0, 0), (0, K_pad - K)))
        wt = jnp.pad(wt, ((0, K_pad - K), (0, 0)))
    if E_pad != E:
        wt = jnp.pad(wt, ((0, 0), (0, E_pad - E)))
        b2 = jnp.pad(b2, ((0, 0), (0, E_pad - E)))

    out_bytes = jnp.dtype(out_dtype).itemsize

    # VMEM working-set budget (safe on v7x's 64 MiB physical VMEM):
    #   resident:  Wt (single-buffered) + bias
    #   streamed:  2 x X tile (bf16) + 2 x out tile (out_dtype)
    budget = 24 * 1024 * 1024
    resident_bytes = K_pad * E_pad * 2 + E_pad * 4
    per_row_bytes = 2 * K_pad * 2 + 2 * E_pad * out_bytes
    tm_budget = max(16, (budget - resident_bytes) // per_row_bytes)

    tm_cap = min(tm, tm_budget)
    if M >= 512:
        tm_cap = min(tm_cap, M // 2)   # >=2 grid steps -> megacore sharding
    TM = _choose_tm(M, tm_cap)

    M_pad = _round_up(M, TM)
    if M_pad != M:
        xp = jnp.pad(xp, ((0, M_pad - M), (0, 0)))

    grid = (M_pad // TM,)

    cost = pl.CostEstimate(
        flops=2 * M_pad * K_pad * E_pad,
        transcendentals=0,
        bytes_accessed=(M_pad * K_pad * 2 + K_pad * E_pad * 2 + E_pad * 4
                        + M_pad * E_pad * out_bytes),
    )

    out = pl.pallas_call(
        _patch_embed_kernel,
        out_shape=jax.ShapeDtypeStruct((M_pad, E_pad), out_dtype),
        grid_spec=pltpu.PrefetchScalarGridSpec(
            num_scalar_prefetch=0,
            grid=grid,
            in_specs=[
                # X tile: streamed (double-buffered) along the M grid axis.
                pl.BlockSpec((TM, K_pad), lambda i: (i, 0)),
                # Weight + bias: constant index_map, single-buffered residents.
                pl.BlockSpec((K_pad, E_pad), lambda i: (0, 0),
                             pipeline_mode=pl.Buffered(1)),
                pl.BlockSpec((1, E_pad), lambda i: (0, 0),
                             pipeline_mode=pl.Buffered(1)),
            ],
            out_specs=pl.BlockSpec((TM, E_pad), lambda i: (i, 0)),
        ),
        compiler_params=pltpu.CompilerParams(
            dimension_semantics=("parallel",),    # megacore sharding on v7x
            vmem_limit_bytes=48 * 1024 * 1024,    # > v5e/v6e defaults, < v7x physical
        ),
        cost_estimate=cost,
    )(xp, wt, b2)

    out = out[:M, :E]
    return out.reshape(B, num_patches, E)


def reference_patch_embed(x, weight, bias, patch_size):
    """Pure-JAX (f32) reference matching the PyTorch conv-based forward."""
    y = jax.lax.conv_general_dilated(
        x, weight,
        window_strides=(patch_size, patch_size),
        padding="VALID",
        dimension_numbers=("NCHW", "OIHW", "NCHW"),
    )
    y = y + bias.reshape(1, -1, 1, 1)
    B, E, Hp, Wp = y.shape
    return jnp.transpose(y.reshape(B, E, Hp * Wp), (0, 2, 1))


if __name__ == "__main__":
    # Small shapes: img_size=16, patch_size=8, in_chans=4, embed_dim=32
    B, C, H, W = 2, 4, 16, 16
    P = 8
    E = 32

    key = jax.random.PRNGKey(0)
    kx, kw, kb = jax.random.split(key, 3)
    x = jax.random.normal(kx, (B, C, H, W), dtype=jnp.float32)
    weight = jax.random.normal(kw, (E, C, P, P), dtype=jnp.float32) * 0.02
    bias = jax.random.normal(kb, (E,), dtype=jnp.float32) * 0.02

    out = jax.block_until_ready(patch_embed(x, weight, bias, P))
    ref = jax.block_until_ready(reference_patch_embed(x, weight, bias, P))

    assert out.shape == (B, (H // P) * (W // P), E), out.shape
    assert out.dtype == jnp.bfloat16, out.dtype
    # bf16 MXU operands + bf16 output (f32 accumulation) vs the f32 reference.
    out_f32 = out.astype(jnp.float32)
    max_err = float(jnp.max(jnp.abs(out_f32 - ref)))
    assert jnp.allclose(out_f32, ref, atol=3e-2, rtol=3e-2), (
        "mismatch vs reference; max abs diff = %s" % max_err)

    print("KERNEL_OK")
</pallas_src>

<mosaic_0001>
module attributes {stable_mosaic.version = 11 : i64} {
  func.func @_patch_embed_kernel(%arg0: i32, %arg1: memref<8x256xbf16, #tpu.memory_space<vmem>>, %arg2: memref<256x128xbf16, #tpu.memory_space<vmem>>, %arg3: memref<1x128xf32, #tpu.memory_space<vmem>>, %arg4: memref<8x128xbf16, #tpu.memory_space<vmem>>) attributes {dimension_semantics = [#tpu.dimension_semantics<parallel>], iteration_bounds = array<i64: 1>, scalar_prefetch = 0 : i64, scratch_operands = 0 : i64, tpu.core_type = #tpu.core_type<tc>, window_params = [{transform_indices = @transform_0, window_bounds = array<i64: 8, 256>}, {pipeline_mode = #tpu.pipeline_mode<synchronous>, transform_indices = @transform_1, window_bounds = array<i64: 256, 128>}, {pipeline_mode = #tpu.pipeline_mode<synchronous>, transform_indices = @transform_2, window_bounds = array<i64: 1, 128>}, {transform_indices = @transform_3, window_bounds = array<i64: 8, 128>}]} {
    %c0 = arith.constant 0 : index
    %c0_0 = arith.constant 0 : index
    %0 = vector.load %arg1[%c0, %c0_0] : memref<8x256xbf16, #tpu.memory_space<vmem>>, vector<8x256xbf16>
    %c0_1 = arith.constant 0 : index
    %c0_2 = arith.constant 0 : index
    %1 = vector.load %arg2[%c0_1, %c0_2] : memref<256x128xbf16, #tpu.memory_space<vmem>>, vector<256x128xbf16>
    %cst = arith.constant dense<0.000000e+00> : vector<8x128xf32>
    %2 = tpu.matmul %0, %1, %cst {dimension_numbers = #tpu.dot_dimension_numbers<[1], [0], [0], [1], [0, 0, 1, 1], [], []>} : vector<8x256xbf16>, vector<256x128xbf16>, vector<8x128xf32> -> vector<8x128xf32>
    %c0_3 = arith.constant 0 : index
    %c0_4 = arith.constant 0 : index
    %3 = vector.load %arg3[%c0_3, %c0_4] : memref<1x128xf32, #tpu.memory_space<vmem>>, vector<1x128xf32>
    %4 = vector.broadcast %3 : vector<1x128xf32> to vector<8x128xf32>
    %5 = arith.addf %2, %4 : vector<8x128xf32>
    %6 = arith.truncf %5 : vector<8x128xf32> to vector<8x128xbf16>
    %c0_5 = arith.constant 0 : index
    %c0_6 = arith.constant 0 : index
    %7 = vector.load %arg4[%c0_5, %c0_6] : memref<8x128xbf16, #tpu.memory_space<vmem>>, vector<8x128xbf16>
    tpu.vector_store %arg4[%c0_5, %c0_6], %6 {strides = array<i32>} : memref<8x128xbf16, #tpu.memory_space<vmem>>, vector<8x128xbf16>,
    return
  }
  func.func @transform_0(%arg0: i32) -> (i32, i32) {
    %c0_i32 = arith.constant 0 : i32
    %c0_i32_0 = arith.constant 0 : i32
    return %arg0, %c0_i32 : i32, i32
  }
  func.func @transform_1(%arg0: i32) -> (i32, i32) {
    %c0_i32 = arith.constant 0 : i32
    %c0_i32_0 = arith.constant 0 : i32
    %c0_i32_1 = arith.constant 0 : i32
    return %c0_i32, %c0_i32_0 : i32, i32
  }
  func.func @transform_2(%arg0: i32) -> (i32, i32) {
    %c0_i32 = arith.constant 0 : i32
    %c0_i32_0 = arith.constant 0 : i32
    %c0_i32_1 = arith.constant 0 : i32
    return %c0_i32, %c0_i32_0 : i32, i32
  }
  func.func @transform_3(%arg0: i32) -> (i32, i32) {
    %c0_i32 = arith.constant 0 : i32
    %c0_i32_0 = arith.constant 0 : i32
    return %arg0, %c0_i32 : i32, i32
  }
}

</mosaic_0001>

<llo_original>
// kernel: patch_embed.1
$region0: #{patch_embed.1}
  #allocation0 [shape = 'u32[]', space=smem, size = 0x4, offset = 0x4, fixed_abs, tag = 'smem constant byte address 0x4 - core index']
  #allocation1 [shape = 'u32[72,128]{1,0:T(1,128)}', space=vmem, size = 0x9000, scoped, tag = 'internal scratch']
  %s0 = inlined_call_operand.vmem [shape: bf16[8,256], index: 0, kind: input, shape index: {}]
  %s1 = inlined_call_operand.vmem [shape: bf16[256,128], index: 1, kind: input, shape index: {}]
  %s2 = inlined_call_operand.vmem [shape: f32[1,128], index: 2, kind: input, shape index: {}]
  %s3 = inlined_call_operand.hbm [shape: bf16[8,128], index: 3, kind: output, shape index: {}]
  %s4 = sld [smem:[#allocation0]]
  $region22: #{patch_embed.1} parent=0
    _
  %s6 = ssub.s32 1, %s4
  %s7 = scalar_select 0, %s6, %s4
  $region1: #{patch_embed.1} parent=0
    #allocation2 [shape = 'u8[2048]{0}', space=vmem, size = 0x800, scoped, tag = 'output window, operand 0, single buffered']
    #allocation3 [shape = 's32[1]{0}', space=sflag, size = 0x4, scoped, tag = 'scoped memory for patch_embed.1']
    %8 = vsyncpa [#allocation3], 0
    // Predicated region
    $region2: #{patch_embed.1} parent=1 // pred_check
      _
    $region3: #{patch_embed.1} parent=1 // pred_check_branch
      %10 = sbr.rel (0) target = $region5
    $region4: #{patch_embed.1} parent=1 // pred_region
      _
    $region5: #{patch_embed.1} parent=1 // pred_fallthru
      _
    // Predicated region
    $region6: #{patch_embed.1} parent=1 // pred_check
      _
    $region7: #{patch_embed.1} parent=1 // pred_check_branch
      %12 = sbr.rel (0) target = $region9
    $region8: #{patch_embed.1} parent=1 // pred_region
      _
    $region9: #{patch_embed.1} parent=1 // pred_fallthru
      _
    // Predicated region
    $region10: #{patch_embed.1} parent=1 // pred_check
      _
    $region11: #{patch_embed.1} parent=1 // pred_check_branch
      %14 = sbr.rel (0) target = $region13
    $region12: #{patch_embed.1} parent=1 // pred_region
      _
    $region13: #{patch_embed.1} parent=1 // pred_fallthru
      _
    %v15 = vld [vmem:[%s0] sm:$0xff]
    %v16 = vld [vmem:[%s1] sm:$0xf]
    %v17 = vld [vmem:[%s1 + $0x4] sm:$0xf]
    %v18 = vld [vmem:[%s1 + $0x8] sm:$0xf]
    %v19 = vld [vmem:[%s1 + $0xc] sm:$0xf]
    %v20 = vld [vmem:[%s1 + $0x10] sm:$0xf]
    %v21 = vld [vmem:[%s1 + $0x14] sm:$0xf]
    %v22 = vld [vmem:[%s1 + $0x18] sm:$0xf]
    %v23 = vld [vmem:[%s1 + $0x1c] sm:$0xf]
    %v24 = vld [vmem:[%s1 + $0x20] sm:$0xf]
    %v25 = vld [vmem:[%s1 + $0x24] sm:$0xf]
    %v26 = vld [vmem:[%s1 + $0x28] sm:$0xf]
    %v27 = vld [vmem:[%s1 + $0x2c] sm:$0xf]
    %v28 = vld [vmem:[%s1 + $0x30] sm:$0xf]
    %v29 = vld [vmem:[%s1 + $0x34] sm:$0xf]
    %v30 = vld [vmem:[%s1 + $0x38] sm:$0xf]
    %v31 = vld [vmem:[%s1 + $0x3c] sm:$0xf]
    %v32 = vld [vmem:[%s1 + $0x40] sm:$0xf]
    %v33 = vld [vmem:[%s1 + $0x44] sm:$0xf]
    %v34 = vld [vmem:[%s1 + $0x48] sm:$0xf]
    %v35 = vld [vmem:[%s1 + $0x4c] sm:$0xf]
    %v36 = vld [vmem:[%s1 + $0x50] sm:$0xf]
    %v37 = vld [vmem:[%s1 + $0x54] sm:$0xf]
    %v38 = vld [vmem:[%s1 + $0x58] sm:$0xf]
    %v39 = vld [vmem:[%s1 + $0x5c] sm:$0xf]
    %v40 = vld [vmem:[%s1 + $0x60] sm:$0xf]
    %v41 = vld [vmem:[%s1 + $0x64] sm:$0xf]
    %v42 = vld [vmem:[%s1 + $0x68] sm:$0xf]
    %v43 = vld [vmem:[%s1 + $0x6c] sm:$0xf]
    %v44 = vld [vmem:[%s1 + $0x70] sm:$0xf]
    %v45 = vld [vmem:[%s1 + $0x74] sm:$0xf]
    %v46 = vld [vmem:[%s1 + $0x78] sm:$0xf]
    %v47 = vld [vmem:[%s1 + $0x7c] sm:$0xf]
    %v48 = vld [vmem:[%s2] sm:$0x1]
    %v50 = vperm.slane %v48, 0
    %v53 = vunpack.c.l.b16 %v15
    %v54 = vunpack.c.h.b16 %v15
    %v55 = vpack.c.b16 %v53, %v53
    %v56 = vpack.c.b16 %v54, %v54
    %v91 = vunpack.c.l.b16 %v16
    %v92 = vunpack.c.l.b16 %v17
    %v93 = vunpack.c.l.b16 %v18
    %v94 = vunpack.c.l.b16 %v19
    %v95 = vunpack.c.l.b16 %v20
    %v96 = vunpack.c.l.b16 %v21
    %v97 = vunpack.c.l.b16 %v22
    %v98 = vunpack.c.l.b16 %v23
    %v99 = vunpack.c.l.b16 %v24
    %v100 = vunpack.c.l.b16 %v25
    %v101 = vunpack.c.l.b16 %v26
    %v102 = vunpack.c.l.b16 %v27
    %v103 = vunpack.c.l.b16 %v28
    %v104 = vunpack.c.l.b16 %v29
    %v105 = vunpack.c.l.b16 %v30
    %v106 = vunpack.c.l.b16 %v31
    %v107 = vunpack.c.l.b16 %v32
    %v108 = vunpack.c.l.b16 %v33
    %v109 = vunpack.c.l.b16 %v34
    %v110 = vunpack.c.l.b16 %v35
    %v111 = vunpack.c.l.b16 %v36
    %v112 = vunpack.c.l.b16 %v37
    %v113 = vunpack.c.l.b16 %v38
    %v114 = vunpack.c.l.b16 %v39
    %v115 = vunpack.c.l.b16 %v40
    %v116 = vunpack.c.l.b16 %v41
    %v117 = vunpack.c.l.b16 %v42
    %v118 = vunpack.c.l.b16 %v43
    %v119 = vunpack.c.l.b16 %v44
    %v120 = vunpack.c.l.b16 %v45
    %v121 = vunpack.c.l.b16 %v46
    %v122 = vunpack.c.l.b16 %v47
    %v123 = vpack.c.b16 %v92, %v91
    %v124 = vpack.c.b16 %v94, %v93
    %v125 = vpack.c.b16 %v96, %v95
    %v126 = vpack.c.b16 %v98, %v97
    %v127 = vpack.c.b16 %v100, %v99
    %v128 = vpack.c.b16 %v102, %v101
    %v129 = vpack.c.b16 %v104, %v103
    %v130 = vpack.c.b16 %v106, %v105
    %v131 = vpack.c.b16 %v108, %v107
    %v132 = vpack.c.b16 %v110, %v109
    %v133 = vpack.c.b16 %v112, %v111
    %v134 = vpack.c.b16 %v114, %v113
    %v135 = vpack.c.b16 %v116, %v115
    %v136 = vpack.c.b16 %v118, %v117
    %v137 = vpack.c.b16 %v120, %v119
    %v138 = vpack.c.b16 %v122, %v121
    %155 = vmatpush.bf16.msra.mxu0 %v130
    %156 = vmatpush.bf16.msra.mxu0 %v129
    %157 = vmatpush.bf16.msra.mxu0 %v128
    %158 = vmatpush.bf16.msra.mxu0 %v127
    %159 = vmatpush.bf16.msra.mxu0 %v126
    %160 = vmatpush.bf16.msra.mxu0 %v125
    %161 = vmatpush.bf16.msra.mxu0 %v124
    %162 = vmatpush.bf16.msra.mxu0 %v123
    %163 = vmatmul.bf16.gmra.mxu0 %v55
    %v164 = vpop.f32.mrf.mxu0
    %v165 = vadd.f32 %v50, %v164
    %v166 = vpop.f32.mrf.mxu0
    %167 = vdwg.mxu0
    %168 = vmatpush.bf16.msra.mxu0 %v138
    %169 = vmatpush.bf16.msra.mxu0 %v137
    %170 = vmatpush.bf16.msra.mxu0 %v136
    %171 = vmatpush.bf16.msra.mxu0 %v135
    %172 = vmatpush.bf16.msra.mxu0 %v134
    %173 = vmatpush.bf16.msra.mxu0 %v133
    %174 = vmatpush.bf16.msra.mxu0 %v132
    %175 = vmatpush.bf16.msra.mxu0 %v131
    %176 = vmatmul.bf16.gmra.mxu0 %v56
    %v177 = vpop.f32.mrf.mxu0
    %v178 = vadd.f32 %v165, %v177
    %v179 = vpop.f32.mrf.mxu0
    %180 = vdwg.mxu0
    %v181 = vpack.c.bf16 %v178, %v178
    %182 = vst [vmem:[#allocation2] sm:$0xf] %v181
    // Predicated region
    $region14: #{patch_embed.1} parent=1 // pred_check
      _
    $region15: #{patch_embed.1} parent=1 // pred_check_branch
      %184 = sbr.rel (0) target = $region17
    $region16: #{patch_embed.1} parent=1 // pred_region
      %186 = vsyncadd [#allocation3], 0
      %s188 = sshll.u32 [#allocation2], 4
      %s189 = int_to_ptr.vmem [resolvable:$true] %s188
      %s190 = sshll.u32 %s3, 4
      %s191 = int_to_ptr.hbm [resolvable:$true] %s190
      %193 = dma.vmem_to_hbm [thread:$0]  %s189, 64, %s191, [#allocation3]
    $region17: #{patch_embed.1} parent=1 // pred_fallthru
      _
    // Predicated region
    $region18: #{patch_embed.1} parent=1 // pred_check
      _
    $region19: #{patch_embed.1} parent=1 // pred_check_branch
      %195 = sbr.rel (0) target = $region21
    $region20: #{patch_embed.1} parent=1 // pred_region
      %197 = dma.done [#allocation3], 64
    $region21: #{patch_embed.1} parent=1 // pred_fallthru
      _
    %198 = vsyncpa [#allocation3], 1

</llo_original>
